<compile_context>
chip_gen: v5e
topology: v5e:2x2
jax: 0.10.0
libtpu: 0.0.40
codegen_flags: <defaults>
</compile_context>

<pallas_src>
import functools

import jax
import jax.numpy as jnp
from jax.experimental import pallas as pl
from jax.experimental.pallas import tpu as pltpu


# ---------------------------------------------------------------------------
# Fused kernel: one grid step per batch tile of `bt` batch elements.
#   x block   : (bt, bins*S, H)
#   weights   : attention W (H,H); folded conv1 (H,H)+(1,H);
#               conv2 reshaped (bins,H,E)+(1,E); folded conv3+head (E,1)+(1,1)
#   out block : (1, bt, 1)
# ---------------------------------------------------------------------------
def fused_kernel(x_ref, wattn_ref, w1_ref, b1_ref, w2_ref, b2_ref,
                 wh_ref, bh_ref, out_ref, *, bins, seq):
    bt = x_ref.shape[0]
    H = x_ref.shape[2]
    R = bt * bins                                   # pooled rows in this tile

    # --- AttentionPool: one big matmul (M = bt*bins*S), softmax over seq ---
    x2 = x_ref[...].reshape(R * seq, H)             # tile-aligned collapse
    logits = jnp.dot(x2, wattn_ref[...],
                     preferred_element_type=jnp.float32)          # (R*S, H)
    l3 = logits.reshape(R, seq, H)                  # tile-aligned split
    m = jnp.max(l3, axis=1, keepdims=True)          # (R, 1, H)
    e = jnp.exp(l3 - m)                             # (R, S, H)
    denom = jnp.sum(e, axis=1, keepdims=True)       # (R, 1, H)
    attn = e * pl.reciprocal(denom, approx=True)    # EUP reciprocal
    x3 = x2.astype(jnp.float32).reshape(R, seq, H)
    pooled = jnp.sum(x3 * attn, axis=1)             # (R, H) -- stays in vregs

    # --- Conv1d(H,H,1) with BatchNorm folded in, then ReLU (Dropout = id) ---
    y1 = jnp.dot(pooled, w1_ref[...],
                 preferred_element_type=jnp.float32) + b1_ref[...]  # (R, H)
    y1 = jnp.maximum(y1, 0.0)

    # --- Conv1d(H, E, kernel_size=bins): full contraction over (bin, channel) ---
    y1_3d = y1.reshape(bt, bins, H)                 # tile-aligned split (bins == 8)
    w2 = w2_ref[...]                                # (bins, H, E)
    E = w2.shape[-1]
    acc = jnp.zeros((bt, E), jnp.float32)
    for n in range(bins):                           # static unroll, bins is small
        acc = acc + jnp.dot(y1_3d[:, n, :], w2[n],
                            preferred_element_type=jnp.float32)    # (bt, E)
    y2 = jnp.maximum(acc + b2_ref[...], 0.0)        # ReLU (must stay in-kernel)

    # --- Conv1d(E,E,1) + Linear(E,1), folded host-side into one (E,1) matmul ---
    out = jnp.dot(y2, wh_ref[...],
                  preferred_element_type=jnp.float32) + bh_ref[...]  # (bt, 1)
    out_ref[0] = out.astype(out_ref.dtype)


def finetunemodel_forward(x, fparams, *, bins, max_block_bytes=4 << 20):
    # TODO(synk): pretrain_model is an external injected module not defined in
    # EAP/model.py; it is treated as an identity passthrough here.
    BN, S, H = x.shape
    B = BN // bins
    E = fparams['w2r'].shape[2]
    assert S % 8 == 0, "seq must be a multiple of 8 for tile-aligned reshapes"
    xr = x.reshape(B, bins * S, H)                  # free host-side reshape

    # Pick the batch tile: whole batch if it fits the VMEM budget, else the
    # largest divisor of B under the budget.
    per_b = bins * S * H * x.dtype.itemsize
    bt = B
    if B * per_b > max_block_bytes:
        bt = max(1, max_block_bytes // per_b)
        while B % bt != 0:
            bt -= 1
    nb = B // bt

    kernel = functools.partial(fused_kernel, bins=bins, seq=S)
    out = pl.pallas_call(
        kernel,
        out_shape=jax.ShapeDtypeStruct((nb, bt, 1), x.dtype),
        grid=(nb,),
        in_specs=[
            pl.BlockSpec((bt, bins * S, H), lambda i: (i, 0, 0)),   # x (batch tile)
            pl.BlockSpec((H, H), lambda i: (0, 0)),                 # w_attn
            pl.BlockSpec((H, H), lambda i: (0, 0)),                 # conv1 (BN folded)
            pl.BlockSpec((1, H), lambda i: (0, 0)),                 # b1 (BN folded)
            pl.BlockSpec((bins, H, E), lambda i: (0, 0, 0)),        # conv2 weight
            pl.BlockSpec((1, E), lambda i: (0, 0)),                 # b2
            pl.BlockSpec((E, 1), lambda i: (0, 0)),                 # conv3+head folded
            pl.BlockSpec((1, 1), lambda i: (0, 0)),                 # folded bias
        ],
        out_specs=pl.BlockSpec((1, bt, 1), lambda i: (i, 0, 0)),
        compiler_params=pltpu.CompilerParams(dimension_semantics=("parallel",)),
    )(xr, fparams['w_attn'], fparams['w1f'], fparams['b1f'],
      fparams['w2r'], fparams['b2'], fparams['w3h'], fparams['b3h'])
    return out.reshape(B, 1)


# ---------------------------------------------------------------------------
# Parameters: raw (torch-equivalent) params + exact host-side folds.
# ---------------------------------------------------------------------------
def make_params(key, hidden_dim, embed_dim, bins):
    H, E = hidden_dim, embed_dim
    ks = jax.random.split(key, 8)
    scale = 0.05
    # AttentionPool: to_attn_logits initialized to identity (as in the module).
    w_attn = jnp.eye(H, dtype=jnp.float32)
    # Conv1d(H, H, 1): (H_in, H_out) matrix (channels-last formulation).
    w1m = scale * jax.random.normal(ks[0], (H, H), jnp.float32)
    b1 = scale * jax.random.normal(ks[1], (1, H), jnp.float32)
    # BatchNorm1d(H), eval mode, default running stats.
    gamma = jnp.ones((H,), jnp.float32)
    beta = jnp.zeros((H,), jnp.float32)
    running_mean = jnp.zeros((H,), jnp.float32)
    running_var = jnp.ones((H,), jnp.float32)
    eps = 1e-5
    bn_scale = (gamma / jnp.sqrt(running_var + eps)).reshape(1, H)
    bn_bias = (beta - running_mean * bn_scale[0]).reshape(1, H)
    # Conv1d(H, E, kernel_size=bins): torch weight (E, H, bins) -> (bins, H, E).
    w2_torch = scale * jax.random.normal(ks[2], (E, H, bins), jnp.float32)
    w2r = jnp.transpose(w2_torch, (2, 1, 0))
    b2 = scale * jax.random.normal(ks[3], (1, E), jnp.float32)
    # Conv1d(E, E, 1): (E_in, E_out).
    w3m = scale * jax.random.normal(ks[4], (E, E), jnp.float32)
    b3 = scale * jax.random.normal(ks[5], (1, E), jnp.float32)
    # Linear(E, 1): (E, 1).
    w_head = scale * jax.random.normal(ks[6], (E, 1), jnp.float32)
    b_head = scale * jax.random.normal(ks[7], (1, 1), jnp.float32)
    return dict(w_attn=w_attn, w1m=w1m, b1=b1, bn_scale=bn_scale, bn_bias=bn_bias,
                w2r=w2r, b2=b2, w3m=w3m, b3=b3, w_head=w_head, b_head=b_head)


def fold_params(p):
    """Exact host-side folds: BN into conv1; conv3 into the prediction head."""
    # y*bn_scale + bn_bias applied after x@w1+b1 (no nonlinearity between) -> fold.
    w1f = p['w1m'] * p['bn_scale']                       # scales output channels
    b1f = p['b1'] * p['bn_scale'] + p['bn_bias']
    # (y2@w3 + b3)@w_head + b_head, no ReLU between conv3 and the head -> fold.
    w3h = p['w3m'] @ p['w_head']                         # (E, 1)
    b3h = p['b3'] @ p['w_head'] + p['b_head']            # (1, 1)
    return dict(w_attn=p['w_attn'], w1f=w1f, b1f=b1f,
                w2r=p['w2r'], b2=p['b2'], w3h=w3h, b3h=b3h)


# ---------------------------------------------------------------------------
# Pure-JAX reference on the UNFOLDED params (checks the folds are exact too).
# ---------------------------------------------------------------------------
def reference_forward(x, p, *, bins):
    BN, S, H = x.shape
    B = BN // bins
    logits = jnp.einsum('bsd,de->bse', x, p['w_attn'])
    attn = jax.nn.softmax(logits, axis=1)
    pooled = jnp.sum(x * attn, axis=1)                   # (BN, H)
    xp = pooled.reshape(B, bins, H)
    y1 = xp @ p['w1m'] + p['b1']
    y1 = y1 * p['bn_scale'] + p['bn_bias']
    y1 = jnp.maximum(y1, 0.0)
    y2 = jnp.einsum('bnc,nce->be', y1, p['w2r']) + p['b2']
    y2 = jnp.maximum(y2, 0.0)
    y3 = y2 @ p['w3m'] + p['b3']
    return y3 @ p['w_head'] + p['b_head']


if __name__ == "__main__":
    B, bins, seq, hidden_dim, embed_dim = 2, 8, 16, 32, 32

    key = jax.random.PRNGKey(0)
    k_x, k_p = jax.random.split(key)
    # Input = what the (identity) pretrain model would produce: (B*bins, seq, hidden).
    x = jax.random.normal(k_x, (B * bins, seq, hidden_dim), jnp.float32)
    params = make_params(k_p, hidden_dim, embed_dim, bins)
    fparams = fold_params(params)

    fwd = jax.jit(functools.partial(finetunemodel_forward, bins=bins))
    out = fwd(x, fparams)
    out = jax.block_until_ready(out)

    ref = reference_forward(x, params, bins=bins)
    assert out.shape == (B, 1), out.shape
    # Tolerance slightly relaxed for the EUP approximate reciprocal in the softmax.
    assert jnp.allclose(out, ref, atol=1e-3, rtol=1e-3), (out, ref)

    print("KERNEL_OK")
</pallas_src>

<mosaic_0001>
module attributes {stable_mosaic.version = 11 : i64} {
  func.func @fused_kernel(%arg0: i32, %arg1: memref<2x128x32xf32, #tpu.memory_space<vmem>>, %arg2: memref<32x32xf32, #tpu.memory_space<vmem>>, %arg3: memref<32x32xf32, #tpu.memory_space<vmem>>, %arg4: memref<1x32xf32, #tpu.memory_space<vmem>>, %arg5: memref<8x32x32xf32, #tpu.memory_space<vmem>>, %arg6: memref<1x32xf32, #tpu.memory_space<vmem>>, %arg7: memref<32x1xf32, #tpu.memory_space<vmem>>, %arg8: memref<1x1xf32, #tpu.memory_space<vmem>>, %arg9: memref<1x2x1xf32, #tpu.memory_space<vmem>>) attributes {dimension_semantics = [#tpu.dimension_semantics<parallel>], iteration_bounds = array<i64: 1>, scalar_prefetch = 0 : i64, scratch_operands = 0 : i64, tpu.core_type = #tpu.core_type<tc>, window_params = [{transform_indices = @transform_0, window_bounds = array<i64: 2, 128, 32>}, {pipeline_mode = #tpu.pipeline_mode<synchronous>, transform_indices = @transform_1, window_bounds = array<i64: 32, 32>}, {pipeline_mode = #tpu.pipeline_mode<synchronous>, transform_indices = @transform_2, window_bounds = array<i64: 32, 32>}, {pipeline_mode = #tpu.pipeline_mode<synchronous>, transform_indices = @transform_3, window_bounds = array<i64: 1, 32>}, {pipeline_mode = #tpu.pipeline_mode<synchronous>, transform_indices = @transform_4, window_bounds = array<i64: 8, 32, 32>}, {pipeline_mode = #tpu.pipeline_mode<synchronous>, transform_indices = @transform_5, window_bounds = array<i64: 1, 32>}, {pipeline_mode = #tpu.pipeline_mode<synchronous>, transform_indices = @transform_6, window_bounds = array<i64: 32, 1>}, {pipeline_mode = #tpu.pipeline_mode<synchronous>, transform_indices = @transform_7, window_bounds = array<i64: 1, 1>}, {transform_indices = @transform_8, window_bounds = array<i64: 1, 2, 1>}]} {
    %c0 = arith.constant 0 : index
    %c0_0 = arith.constant 0 : index
    %c0_1 = arith.constant 0 : index
    %0 = vector.load %arg1[%c0, %c0_0, %c0_1] : memref<2x128x32xf32, #tpu.memory_space<vmem>>, vector<2x128x32xf32>
    %1 = vector.shape_cast %0 : vector<2x128x32xf32> to vector<256x32xf32>
    %c0_2 = arith.constant 0 : index
    %c0_3 = arith.constant 0 : index
    %2 = vector.load %arg2[%c0_2, %c0_3] : memref<32x32xf32, #tpu.memory_space<vmem>>, vector<32x32xf32>
    %cst = arith.constant dense<0.000000e+00> : vector<256x32xf32>
    %3 = tpu.matmul %1, %2, %cst {dimension_numbers = #tpu.dot_dimension_numbers<[1], [0], [0], [1], [0, 0, 1, 1], [], []>} : vector<256x32xf32>, vector<32x32xf32>, vector<256x32xf32> -> vector<256x32xf32>
    %4 = vector.shape_cast %3 : vector<256x32xf32> to vector<16x16x32xf32>
    %cst_4 = arith.constant dense<0xFF800000> : vector<16x32xf32>
    %5 = vector.multi_reduction <maximumf>, %4, %cst_4 [1] : vector<16x16x32xf32> to vector<16x32xf32>
    %6 = vector.shape_cast %5 : vector<16x32xf32> to vector<16x1x32xf32>
    %7 = vector.broadcast %6 : vector<16x1x32xf32> to vector<16x16x32xf32>
    %8 = arith.subf %4, %7 : vector<16x16x32xf32>
    %9 = math.exp %8 : vector<16x16x32xf32>
    %cst_5 = arith.constant dense<0.000000e+00> : vector<16x32xf32>
    %10 = vector.multi_reduction <add>, %9, %cst_5 [1] : vector<16x16x32xf32> to vector<16x32xf32>
    %11 = vector.shape_cast %10 : vector<16x32xf32> to vector<16x1x32xf32>
    %12 = tpu.reciprocal %11 {approx = true} : vector<16x1x32xf32> -> vector<16x1x32xf32>
    %13 = vector.broadcast %12 : vector<16x1x32xf32> to vector<16x16x32xf32>
    %14 = arith.mulf %9, %13 : vector<16x16x32xf32>
    %15 = vector.shape_cast %1 : vector<256x32xf32> to vector<16x16x32xf32>
    %16 = arith.mulf %15, %14 : vector<16x16x32xf32>
    %cst_6 = arith.constant dense<0.000000e+00> : vector<16x32xf32>
    %17 = vector.multi_reduction <add>, %16, %cst_6 [1] : vector<16x16x32xf32> to vector<16x32xf32>
    %c0_7 = arith.constant 0 : index
    %c0_8 = arith.constant 0 : index
    %18 = vector.load %arg3[%c0_7, %c0_8] : memref<32x32xf32, #tpu.memory_space<vmem>>, vector<32x32xf32>
    %cst_9 = arith.constant dense<0.000000e+00> : vector<16x32xf32>
    %19 = tpu.matmul %17, %18, %cst_9 {dimension_numbers = #tpu.dot_dimension_numbers<[1], [0], [0], [1], [0, 0, 1, 1], [], []>} : vector<16x32xf32>, vector<32x32xf32>, vector<16x32xf32> -> vector<16x32xf32>
    %c0_10 = arith.constant 0 : index
    %c0_11 = arith.constant 0 : index
    %20 = vector.load %arg4[%c0_10, %c0_11] : memref<1x32xf32, #tpu.memory_space<vmem>>, vector<1x32xf32>
    %21 = vector.broadcast %20 : vector<1x32xf32> to vector<16x32xf32>
    %22 = arith.addf %19, %21 : vector<16x32xf32>
    %cst_12 = arith.constant 0.000000e+00 : f32
    %23 = vector.broadcast %cst_12 : f32 to vector<16x32xf32>
    %24 = arith.maximumf %22, %23 : vector<16x32xf32>
    %25 = vector.shape_cast %24 : vector<16x32xf32> to vector<2x8x32xf32>
    %c0_13 = arith.constant 0 : index
    %c0_14 = arith.constant 0 : index
    %c0_15 = arith.constant 0 : index
    %26 = vector.load %arg5[%c0_13, %c0_14, %c0_15] : memref<8x32x32xf32, #tpu.memory_space<vmem>>, vector<8x32x32xf32>
    %cst_16 = arith.constant 0.000000e+00 : f32
    %27 = vector.broadcast %cst_16 : f32 to vector<2x32xf32>
    %28 = vector.extract_strided_slice %25 {offsets = [0, 0, 0], sizes = [2, 1, 32], strides = [1, 1, 1]} : vector<2x8x32xf32> to vector<2x1x32xf32>
    %29 = vector.shape_cast %28 : vector<2x1x32xf32> to vector<2x32xf32>
    %30 = vector.extract_strided_slice %26 {offsets = [0, 0, 0], sizes = [1, 32, 32], strides = [1, 1, 1]} : vector<8x32x32xf32> to vector<1x32x32xf32>
    %31 = vector.shape_cast %30 : vector<1x32x32xf32> to vector<32x32xf32>
    %cst_17 = arith.constant dense<0.000000e+00> : vector<2x32xf32>
    %32 = tpu.matmul %29, %31, %cst_17 {dimension_numbers = #tpu.dot_dimension_numbers<[1], [0], [0], [1], [0, 0, 1, 1], [], []>} : vector<2x32xf32>, vector<32x32xf32>, vector<2x32xf32> -> vector<2x32xf32>
    %33 = arith.addf %27, %32 : vector<2x32xf32>
    %34 = vector.extract_strided_slice %25 {offsets = [0, 1, 0], sizes = [2, 1, 32], strides = [1, 1, 1]} : vector<2x8x32xf32> to vector<2x1x32xf32>
    %35 = vector.shape_cast %34 : vector<2x1x32xf32> to vector<2x32xf32>
    %36 = vector.extract_strided_slice %26 {offsets = [1, 0, 0], sizes = [1, 32, 32], strides = [1, 1, 1]} : vector<8x32x32xf32> to vector<1x32x32xf32>
    %37 = vector.shape_cast %36 : vector<1x32x32xf32> to vector<32x32xf32>
    %cst_18 = arith.constant dense<0.000000e+00> : vector<2x32xf32>
    %38 = tpu.matmul %35, %37, %cst_18 {dimension_numbers = #tpu.dot_dimension_numbers<[1], [0], [0], [1], [0, 0, 1, 1], [], []>} : vector<2x32xf32>, vector<32x32xf32>, vector<2x32xf32> -> vector<2x32xf32>
    %39 = arith.addf %33, %38 : vector<2x32xf32>
    %40 = vector.extract_strided_slice %25 {offsets = [0, 2, 0], sizes = [2, 1, 32], strides = [1, 1, 1]} : vector<2x8x32xf32> to vector<2x1x32xf32>
    %41 = vector.shape_cast %40 : vector<2x1x32xf32> to vector<2x32xf32>
    %42 = vector.extract_strided_slice %26 {offsets = [2, 0, 0], sizes = [1, 32, 32], strides = [1, 1, 1]} : vector<8x32x32xf32> to vector<1x32x32xf32>
    %43 = vector.shape_cast %42 : vector<1x32x32xf32> to vector<32x32xf32>
    %cst_19 = arith.constant dense<0.000000e+00> : vector<2x32xf32>
    %44 = tpu.matmul %41, %43, %cst_19 {dimension_numbers = #tpu.dot_dimension_numbers<[1], [0], [0], [1], [0, 0, 1, 1], [], []>} : vector<2x32xf32>, vector<32x32xf32>, vector<2x32xf32> -> vector<2x32xf32>
    %45 = arith.addf %39, %44 : vector<2x32xf32>
    %46 = vector.extract_strided_slice %25 {offsets = [0, 3, 0], sizes = [2, 1, 32], strides = [1, 1, 1]} : vector<2x8x32xf32> to vector<2x1x32xf32>
    %47 = vector.shape_cast %46 : vector<2x1x32xf32> to vector<2x32xf32>
    %48 = vector.extract_strided_slice %26 {offsets = [3, 0, 0], sizes = [1, 32, 32], strides = [1, 1, 1]} : vector<8x32x32xf32> to vector<1x32x32xf32>
    %49 = vector.shape_cast %48 : vector<1x32x32xf32> to vector<32x32xf32>
    %cst_20 = arith.constant dense<0.000000e+00> : vector<2x32xf32>
    %50 = tpu.matmul %47, %49, %cst_20 {dimension_numbers = #tpu.dot_dimension_numbers<[1], [0], [0], [1], [0, 0, 1, 1], [], []>} : vector<2x32xf32>, vector<32x32xf32>, vector<2x32xf32> -> vector<2x32xf32>
    %51 = arith.addf %45, %50 : vector<2x32xf32>
    %52 = vector.extract_strided_slice %25 {offsets = [0, 4, 0], sizes = [2, 1, 32], strides = [1, 1, 1]} : vector<2x8x32xf32> to vector<2x1x32xf32>
    %53 = vector.shape_cast %52 : vector<2x1x32xf32> to vector<2x32xf32>
    %54 = vector.extract_strided_slice %26 {offsets = [4, 0, 0], sizes = [1, 32, 32], strides = [1, 1, 1]} : vector<8x32x32xf32> to vector<1x32x32xf32>
    %55 = vector.shape_cast %54 : vector<1x32x32xf32> to vector<32x32xf32>
    %cst_21 = arith.constant dense<0.000000e+00> : vector<2x32xf32>
    %56 = tpu.matmul %53, %55, %cst_21 {dimension_numbers = #tpu.dot_dimension_numbers<[1], [0], [0], [1], [0, 0, 1, 1], [], []>} : vector<2x32xf32>, vector<32x32xf32>, vector<2x32xf32> -> vector<2x32xf32>
    %57 = arith.addf %51, %56 : vector<2x32xf32>
    %58 = vector.extract_strided_slice %25 {offsets = [0, 5, 0], sizes = [2, 1, 32], strides = [1, 1, 1]} : vector<2x8x32xf32> to vector<2x1x32xf32>
    %59 = vector.shape_cast %58 : vector<2x1x32xf32> to vector<2x32xf32>
    %60 = vector.extract_strided_slice %26 {offsets = [5, 0, 0], sizes = [1, 32, 32], strides = [1, 1, 1]} : vector<8x32x32xf32> to vector<1x32x32xf32>
    %61 = vector.shape_cast %60 : vector<1x32x32xf32> to vector<32x32xf32>
    %cst_22 = arith.constant dense<0.000000e+00> : vector<2x32xf32>
    %62 = tpu.matmul %59, %61, %cst_22 {dimension_numbers = #tpu.dot_dimension_numbers<[1], [0], [0], [1], [0, 0, 1, 1], [], []>} : vector<2x32xf32>, vector<32x32xf32>, vector<2x32xf32> -> vector<2x32xf32>
    %63 = arith.addf %57, %62 : vector<2x32xf32>
    %64 = vector.extract_strided_slice %25 {offsets = [0, 6, 0], sizes = [2, 1, 32], strides = [1, 1, 1]} : vector<2x8x32xf32> to vector<2x1x32xf32>
    %65 = vector.shape_cast %64 : vector<2x1x32xf32> to vector<2x32xf32>
    %66 = vector.extract_strided_slice %26 {offsets = [6, 0, 0], sizes = [1, 32, 32], strides = [1, 1, 1]} : vector<8x32x32xf32> to vector<1x32x32xf32>
    %67 = vector.shape_cast %66 : vector<1x32x32xf32> to vector<32x32xf32>
    %cst_23 = arith.constant dense<0.000000e+00> : vector<2x32xf32>
    %68 = tpu.matmul %65, %67, %cst_23 {dimension_numbers = #tpu.dot_dimension_numbers<[1], [0], [0], [1], [0, 0, 1, 1], [], []>} : vector<2x32xf32>, vector<32x32xf32>, vector<2x32xf32> -> vector<2x32xf32>
    %69 = arith.addf %63, %68 : vector<2x32xf32>
    %70 = vector.extract_strided_slice %25 {offsets = [0, 7, 0], sizes = [2, 1, 32], strides = [1, 1, 1]} : vector<2x8x32xf32> to vector<2x1x32xf32>
    %71 = vector.shape_cast %70 : vector<2x1x32xf32> to vector<2x32xf32>
    %72 = vector.extract_strided_slice %26 {offsets = [7, 0, 0], sizes = [1, 32, 32], strides = [1, 1, 1]} : vector<8x32x32xf32> to vector<1x32x32xf32>
    %73 = vector.shape_cast %72 : vector<1x32x32xf32> to vector<32x32xf32>
    %cst_24 = arith.constant dense<0.000000e+00> : vector<2x32xf32>
    %74 = tpu.matmul %71, %73, %cst_24 {dimension_numbers = #tpu.dot_dimension_numbers<[1], [0], [0], [1], [0, 0, 1, 1], [], []>} : vector<2x32xf32>, vector<32x32xf32>, vector<2x32xf32> -> vector<2x32xf32>
    %75 = arith.addf %69, %74 : vector<2x32xf32>
    %c0_25 = arith.constant 0 : index
    %c0_26 = arith.constant 0 : index
    %76 = vector.load %arg6[%c0_25, %c0_26] : memref<1x32xf32, #tpu.memory_space<vmem>>, vector<1x32xf32>
    %77 = vector.broadcast %76 : vector<1x32xf32> to vector<2x32xf32>
    %78 = arith.addf %75, %77 : vector<2x32xf32>
    %cst_27 = arith.constant 0.000000e+00 : f32
    %79 = vector.broadcast %cst_27 : f32 to vector<2x32xf32>
    %80 = arith.maximumf %78, %79 : vector<2x32xf32>
    %c0_28 = arith.constant 0 : index
    %c0_29 = arith.constant 0 : index
    %81 = vector.load %arg7[%c0_28, %c0_29] : memref<32x1xf32, #tpu.memory_space<vmem>>, vector<32x1xf32>
    %cst_30 = arith.constant dense<0.000000e+00> : vector<2x1xf32>
    %82 = tpu.matmul %80, %81, %cst_30 {dimension_numbers = #tpu.dot_dimension_numbers<[1], [0], [0], [1], [0, 0, 1, 1], [], []>} : vector<2x32xf32>, vector<32x1xf32>, vector<2x1xf32> -> vector<2x1xf32>
    %c0_31 = arith.constant 0 : index
    %c0_32 = arith.constant 0 : index
    %83 = vector.load %arg8[%c0_31, %c0_32] : memref<1x1xf32, #tpu.memory_space<vmem>>, vector<1x1xf32>
    %84 = vector.broadcast %83 : vector<1x1xf32> to vector<2x1xf32>
    %85 = arith.addf %82, %84 : vector<2x1xf32>
    %c0_33 = arith.constant 0 : index
    %c0_34 = arith.constant 0 : index
    %c0_35 = arith.constant 0 : index
    %86 = vector.load %arg9[%c0_33, %c0_34, %c0_35] : memref<1x2x1xf32, #tpu.memory_space<vmem>>, vector<1x2x1xf32>
    %87 = vector.shape_cast %86 : vector<1x2x1xf32> to vector<2x1xf32>
    %88 = vector.shape_cast %85 : vector<2x1xf32> to vector<1x2x1xf32>
    tpu.vector_store %arg9[%c0_33, %c0_34, %c0_35], %88 {strides = array<i32>} : memref<1x2x1xf32, #tpu.memory_space<vmem>>, vector<1x2x1xf32>,
    return
  }
  func.func @transform_0(%arg0: i32) -> (i32, i32, i32) {
    %c0_i32 = arith.constant 0 : i32
    %c0_i32_0 = arith.constant 0 : i32
    %c0_i32_1 = arith.constant 0 : i32
    return %arg0, %c0_i32, %c0_i32_0 : i32, i32, i32
  }
  func.func @transform_1(%arg0: i32) -> (i32, i32) {
    %c0_i32 = arith.constant 0 : i32
    %c0_i32_0 = arith.constant 0 : i32
    %c0_i32_1 = arith.constant 0 : i32
    return %c0_i32, %c0_i32_0 : i32, i32
  }
  func.func @transform_2(%arg0: i32) -> (i32, i32) {
    %c0_i32 = arith.constant 0 : i32
    %c0_i32_0 = arith.constant 0 : i32
    %c0_i32_1 = arith.constant 0 : i32
    return %c0_i32, %c0_i32_0 : i32, i32
  }
  func.func @transform_3(%arg0: i32) -> (i32, i32) {
    %c0_i32 = arith.constant 0 : i32
    %c0_i32_0 = arith.constant 0 : i32
    %c0_i32_1 = arith.constant 0 : i32
    return %c0_i32, %c0_i32_0 : i32, i32
  }
  func.func @transform_4(%arg0: i32) -> (i32, i32, i32) {
    %c0_i32 = arith.constant 0 : i32
    %c0_i32_0 = arith.constant 0 : i32
    %c0_i32_1 = arith.constant 0 : i32
    %c0_i32_2 = arith.constant 0 : i32
    return %c0_i32, %c0_i32_0, %c0_i32_1 : i32, i32, i32
  }
  func.func @transform_5(%arg0: i32) -> (i32, i32) {
    %c0_i32 = arith.constant 0 : i32
    %c0_i32_0 = arith.constant 0 : i32
    %c0_i32_1 = arith.constant 0 : i32
    return %c0_i32, %c0_i32_0 : i32, i32
  }
  func.func @transform_6(%arg0: i32) -> (i32, i32) {
    %c0_i32 = arith.constant 0 : i32
    %c0_i32_0 = arith.constant 0 : i32
    %c0_i32_1 = arith.constant 0 : i32
    return %c0_i32, %c0_i32_0 : i32, i32
  }
  func.func @transform_7(%arg0: i32) -> (i32, i32) {
    %c0_i32 = arith.constant 0 : i32
    %c0_i32_0 = arith.constant 0 : i32
    %c0_i32_1 = arith.constant 0 : i32
    return %c0_i32, %c0_i32_0 : i32, i32
  }
  func.func @transform_8(%arg0: i32) -> (i32, i32, i32) {
    %c0_i32 = arith.constant 0 : i32
    %c0_i32_0 = arith.constant 0 : i32
    %c0_i32_1 = arith.constant 0 : i32
    return %arg0, %c0_i32, %c0_i32_0 : i32, i32, i32
  }
}

</mosaic_0001>

<llo_original>
// kernel: finetunemodel_forward.1
$region0: #{finetunemodel_forward.1}
  #allocation0 [shape = 'u32[]', space=smem, size = 0x4, offset = 0x4, fixed_abs, tag = 'smem constant byte address 0x4 - core index']
  #allocation1 [shape = 'u32[72,128]{1,0:T(1,128)}', space=vmem, size = 0x9000, scoped, tag = 'internal scratch']
  #allocation2 [shape = 'f32[1,1]{1,0:T(1,128)S(1)}', space=vmem, size = 0x200, scoped, tag = 'scoped memory for finetunemodel_forward.1']
  %s0 = inlined_call_operand.hbm [shape: f32[2,128,32], index: 0, kind: input, shape index: {}]
  %s1 = inlined_call_operand.vmem [shape: f32[32,32], index: 1, kind: input, shape index: {}]
  %s2 = inlined_call_operand.hbm [shape: f32[32,32], index: 2, kind: input, shape index: {}]
  %s3 = inlined_call_operand.vmem [shape: f32[1,32], index: 3, kind: input, shape index: {}]
  %s4 = inlined_call_operand.hbm [shape: f32[8,32,32], index: 4, kind: input, shape index: {}]
  %s5 = inlined_call_operand.vmem [shape: f32[1,32], index: 5, kind: input, shape index: {}]
  %s6 = inlined_call_operand.vmem [shape: f32[32,1], index: 6, kind: input, shape index: {}]
  %s7 = inlined_call_operand.<no memory space> [shape: f32[1,1], index: 7, kind: input, shape index: {}]
  %s8 = inlined_call_operand.vmem [shape: f32[1,2,1], index: 8, kind: output, shape index: {}]
  %s9 = sld [smem:[#allocation0]]
  $region54: #{finetunemodel_forward.1} parent=0
    _
  %s11 = ssub.s32 1, %s9
  %s12 = scalar_select 0, %s11, %s9
  %v13 = vstv %s7
  %14 = vst [vmem:[#allocation2] sm:$0x1] %v13
  $region1: #{finetunemodel_forward.1} parent=0
    #allocation3 [shape = 'u8[131072]{0}', space=vmem, size = 0x20000, scoped, tag = 'input window, operand 0, single buffered']
    #allocation4 [shape = 's32[1]{0}', space=sflag, size = 0x4, scoped, tag = 'scoped memory for finetunemodel_forward.1']
    #allocation5 [shape = 'u8[16384]{0}', space=vmem, size = 0x4000, scoped, tag = 'input window, operand 2, single buffered']
    #allocation6 [shape = 's32[1]{0}', space=sflag, size = 0x4, scoped, tag = 'scoped memory for finetunemodel_forward.1']
    #allocation7 [shape = 'u8[131072]{0}', space=vmem, size = 0x20000, scoped, tag = 'input window, operand 4, single buffered']
    %15 = vsyncpa [#allocation4], 0
    %16 = vsyncpa [#allocation6], 0
    // Predicated region
    $region2: #{finetunemodel_forward.1} parent=1 // pred_check
      _
    $region3: #{finetunemodel_forward.1} parent=1 // pred_check_branch
      %18 = sbr.rel (0) target = $region5
    $region4: #{finetunemodel_forward.1} parent=1 // pred_region
      %20 = vsyncadd [#allocation4], 0
      %s21 = sshll.u32 %s0, 4
      %s22 = int_to_ptr.hbm [resolvable:$true] %s21
      %s23 = sshll.u32 [#allocation3], 4
      %s24 = int_to_ptr.vmem [resolvable:$true] %s23
      %29 = dma.hbm_to_vmem [thread:$0]  %s22, 4096, %s24, [#allocation4], 128, 128, 8
    $region5: #{finetunemodel_forward.1} parent=1 // pred_fallthru
      _
    // Predicated region
    $region6: #{finetunemodel_forward.1} parent=1 // pred_check
      _
    $region7: #{finetunemodel_forward.1} parent=1 // pred_check_branch
      %31 = sbr.rel (0) target = $region9
    $region8: #{finetunemodel_forward.1} parent=1 // pred_region
      _
    $region9: #{finetunemodel_forward.1} parent=1 // pred_fallthru
      _
    // Predicated region
    $region10: #{finetunemodel_forward.1} parent=1 // pred_check
      _
    $region11: #{finetunemodel_forward.1} parent=1 // pred_check_branch
      %33 = sbr.rel (0) target = $region13
    $region12: #{finetunemodel_forward.1} parent=1 // pred_region
      %35 = vsyncadd [#allocation6], 0
      %s36 = sshll.u32 %s2, 4
      %s37 = int_to_ptr.hbm [resolvable:$true] %s36
      %s38 = sshll.u32 [#allocation5], 4
      %s39 = int_to_ptr.vmem [resolvable:$true] %s38
      %44 = dma.hbm_to_vmem [thread:$0]  %s37, 512, %s39, [#allocation6], 128, 128, 8
    $region13: #{finetunemodel_forward.1} parent=1 // pred_fallthru
      _
    // Predicated region
    $region14: #{finetunemodel_forward.1} parent=1 // pred_check
      _
    $region15: #{finetunemodel_forward.1} parent=1 // pred_check_branch
      %46 = sbr.rel (0) target = $region17
    $region16: #{finetunemodel_forward.1} parent=1 // pred_region
      _
    $region17: #{finetunemodel_forward.1} parent=1 // pred_fallthru
      _
    // Predicated region
    $region18: #{finetunemodel_forward.1} parent=1 // pred_check
      _
    $region19: #{finetunemodel_forward.1} parent=1 // pred_check_branch
      %48 = sbr.rel (0) target = $region21
    $region20: #{finetunemodel_forward.1} parent=1 // pred_region
      %50 = vsyncadd [#allocation6], 0
      %s51 = sshll.u32 %s4, 4
      %s52 = int_to_ptr.hbm [resolvable:$true] %s51
      %s53 = sshll.u32 [#allocation7], 4
      %s54 = int_to_ptr.vmem [resolvable:$true] %s53
      %59 = dma.hbm_to_vmem [thread:$0]  %s52, 4096, %s54, [#allocation6], 128, 128, 8
    $region21: #{finetunemodel_forward.1} parent=1 // pred_fallthru
      _
    // Predicated region
    $region22: #{finetunemodel_forward.1} parent=1 // pred_check
      _
    $region23: #{finetunemodel_forward.1} parent=1 // pred_check_branch
      %61 = sbr.rel (0) target = $region25
    $region24: #{finetunemodel_forward.1} parent=1 // pred_region
      _
    $region25: #{finetunemodel_forward.1} parent=1 // pred_fallthru
      _
    // Predicated region
    $region26: #{finetunemodel_forward.1} parent=1 // pred_check
      _
    $region27: #{finetunemodel_forward.1} parent=1 // pred_check_branch
      %63 = sbr.rel (0) target = $region29
    $region28: #{finetunemodel_forward.1} parent=1 // pred_region
      _
    $region29: #{finetunemodel_forward.1} parent=1 // pred_fallthru
      _
    // Predicated region
    $region30: #{finetunemodel_forward.1} parent=1 // pred_check
      _
    $region31: #{finetunemodel_forward.1} parent=1 // pred_check_branch
      %65 = sbr.rel (0) target = $region33
    $region32: #{finetunemodel_forward.1} parent=1 // pred_region
      _
    $region33: #{finetunemodel_forward.1} parent=1 // pred_fallthru
      _
    // Predicated region
    $region34: #{finetunemodel_forward.1} parent=1 // pred_check
      _
    $region35: #{finetunemodel_forward.1} parent=1 // pred_check_branch
      %67 = sbr.rel (0) target = $region37
    $region36: #{finetunemodel_forward.1} parent=1 // pred_region
      %69 = dma.done [#allocation4], 4096
    $region37: #{finetunemodel_forward.1} parent=1 // pred_fallthru
      _
    // Predicated region
    $region38: #{finetunemodel_forward.1} parent=1 // pred_check
      _
    $region39: #{finetunemodel_forward.1} parent=1 // pred_check_branch
      %71 = sbr.rel (0) target = $region41
    $region40: #{finetunemodel_forward.1} parent=1 // pred_region
      %73 = dma.done [#allocation6], 512
    $region41: #{finetunemodel_forward.1} parent=1 // pred_fallthru
      _
    // Predicated region
    $region42: #{finetunemodel_forward.1} parent=1 // pred_check
      _
    $region43: #{finetunemodel_forward.1} parent=1 // pred_check_branch
      %75 = sbr.rel (0) target = $region45
    $region44: #{finetunemodel_forward.1} parent=1 // pred_region
      %77 = dma.done [#allocation6], 4096
    $region45: #{finetunemodel_forward.1} parent=1 // pred_fallthru
      _
    %v78 = vld [vmem:[#allocation3] sm:$0xff]
    %v79 = vld [vmem:[#allocation3 + $0x8] sm:$0xff]
    %v80 = vld [vmem:[#allocation3 + $0x10] sm:$0xff]
    %v81 = vld [vmem:[#allocation3 + $0x18] sm:$0xff]
    %v82 = vld [vmem:[#allocation3 + $0x20] sm:$0xff]
    %v83 = vld [vmem:[#allocation3 + $0x28] sm:$0xff]
    %v84 = vld [vmem:[#allocation3 + $0x30] sm:$0xff]
    %v85 = vld [vmem:[#allocation3 + $0x38] sm:$0xff]
    %v86 = vld [vmem:[#allocation3 + $0x40] sm:$0xff]
    %v87 = vld [vmem:[#allocation3 + $0x48] sm:$0xff]
    %v88 = vld [vmem:[#allocation3 + $0x50] sm:$0xff]
    %v89 = vld [vmem:[#allocation3 + $0x58] sm:$0xff]
    %v90 = vld [vmem:[#allocation3 + $0x60] sm:$0xff]
    %v91 = vld [vmem:[#allocation3 + $0x68] sm:$0xff]
    %v92 = vld [vmem:[#allocation3 + $0x70] sm:$0xff]
    %v93 = vld [vmem:[#allocation3 + $0x78] sm:$0xff]
    %v94 = vld [vmem:[#allocation3 + $0x80] sm:$0xff]
    %v95 = vld [vmem:[#allocation3 + $0x88] sm:$0xff]
    %v96 = vld [vmem:[#allocation3 + $0x90] sm:$0xff]
    %v97 = vld [vmem:[#allocation3 + $0x98] sm:$0xff]
    %v98 = vld [vmem:[#allocation3 + $0xa0] sm:$0xff]
    %v99 = vld [vmem:[#allocation3 + $0xa8] sm:$0xff]
    %v100 = vld [vmem:[#allocation3 + $0xb0] sm:$0xff]
    %v101 = vld [vmem:[#allocation3 + $0xb8] sm:$0xff]
    %v102 = vld [vmem:[#allocation3 + $0xc0] sm:$0xff]
    %v103 = vld [vmem:[#allocation3 + $0xc8] sm:$0xff]
    %v104 = vld [vmem:[#allocation3 + $0xd0] sm:$0xff]
    %v105 = vld [vmem:[#allocation3 + $0xd8] sm:$0xff]
    %v106 = vld [vmem:[#allocation3 + $0xe0] sm:$0xff]
    %v107 = vld [vmem:[#allocation3 + $0xe8] sm:$0xff]
    %v108 = vld [vmem:[#allocation3 + $0xf0] sm:$0xff]
    %v109 = vld [vmem:[#allocation3 + $0xf8] sm:$0xff]
    %v110 = vld [vmem:[%s1] sm:$0xff]
    %v111 = vld [vmem:[%s1 + $0x8] sm:$0xff]
    %v112 = vld [vmem:[%s1 + $0x10] sm:$0xff]
    %v113 = vld [vmem:[%s1 + $0x18] sm:$0xff]
    %vm114 = vcmask 261120
    %v116 = vsel %vm114, %v78, 0
    %v119 = vsel %vm114, %v79, 0
    %v122 = vsel %vm114, %v80, 0
    %v125 = vsel %vm114, %v81, 0
    %v128 = vsel %vm114, %v82, 0
    %v131 = vsel %vm114, %v83, 0
    %v134 = vsel %vm114, %v84, 0
    %v137 = vsel %vm114, %v85, 0
    %v140 = vsel %vm114, %v86, 0
    %v143 = vsel %vm114, %v87, 0
    %v146 = vsel %vm114, %v88, 0
    %v149 = vsel %vm114, %v89, 0
    %v152 = vsel %vm114, %v90, 0
    %v155 = vsel %vm114, %v91, 0
    %v158 = vsel %vm114, %v92, 0
    %v161 = vsel %vm114, %v93, 0
    %v164 = vsel %vm114, %v94, 0
    %v167 = vsel %vm114, %v95, 0
    %v170 = vsel %vm114, %v96, 0
    %v173 = vsel %vm114, %v97, 0
    %v176 = vsel %vm114, %v98, 0
    %v179 = vsel %vm114, %v99, 0
    %v182 = vsel %vm114, %v100, 0
    %v185 = vsel %vm114, %v101, 0
    %v188 = vsel %vm114, %v102, 0
    %v191 = vsel %vm114, %v103, 0
    %v194 = vsel %vm114, %v104, 0
    %v197 = vsel %vm114, %v105, 0
    %v200 = vsel %vm114, %v106, 0
    %v203 = vsel %vm114, %v107, 0
    %v206 = vsel %vm114, %v108, 0
    %v209 = vsel %vm114, %v109, 0
    %211 = vmatpush.msra.mxu0 0.0
    %212 = vmatpush.msra.mxu0 0.0
    %213 = vmatpush.msra.mxu0 0.0
    %214 = vmatpush.msra.mxu0 0.0
    %215 = vmatpush.msra.mxu0 0.0
    %216 = vmatpush.msra.mxu0 0.0
    %217 = vmatpush.msra.mxu0 0.0
    %218 = vmatpush.msra.mxu0 0.0
    %219 = vmatpush.msra.mxu0 0.0
    %220 = vmatpush.msra.mxu0 0.0
    %221 = vmatpush.msra.mxu0 0.0
    %222 = vmatpush.msra.mxu0 0.0
    %223 = vmatpush.msra.mxu0 %v113
    %224 = vmatpush.msra.mxu0 %v112
    %225 = vmatpush.msra.mxu0 %v111
    %226 = vmatpush.msra.mxu0 %v110
    %227 = vmatmul.f32.gmra.mxu0 %v116
    %v228 = vpop.f32.mrf.mxu0
    %v229 = vadd.f32 0.0, %v228
    %230 = vmatmul.f32.gmra.mxu0 %v119
    %v231 = vpop.f32.mrf.mxu0
    %v232 = vadd.f32 0.0, %v231
    %233 = vmatmul.f32.gmra.mxu0 %v122
    %v234 = vpop.f32.mrf.mxu0
    %v235 = vadd.f32 0.0, %v234
    %236 = vmatmul.f32.gmra.mxu0 %v125
    %v237 = vpop.f32.mrf.mxu0
    %v238 = vadd.f32 0.0, %v237
    %239 = vmatmul.f32.gmra.mxu0 %v128
    %v240 = vpop.f32.mrf.mxu0
    %v241 = vadd.f32 0.0, %v240
    %242 = vmatmul.f32.gmra.mxu0 %v131
    %v243 = vpop.f32.mrf.mxu0
    %v244 = vadd.f32 0.0, %v243
    %245 = vmatmul.f32.gmra.mxu0 %v134
    %v246 = vpop.f32.mrf.mxu0
    %v247 = vadd.f32 0.0, %v246
    %248 = vmatmul.f32.gmra.mxu0 %v137
    %v249 = vpop.f32.mrf.mxu0
    %v250 = vadd.f32 0.0, %v249
    %251 = vmatmul.f32.gmra.mxu0 %v140
    %v252 = vpop.f32.mrf.mxu0
    %v253 = vadd.f32 0.0, %v252
    %254 = vmatmul.f32.gmra.mxu0 %v143
    %v255 = vpop.f32.mrf.mxu0
    %v256 = vadd.f32 0.0, %v255
    %257 = vmatmul.f32.gmra.mxu0 %v146
    %v258 = vpop.f32.mrf.mxu0
    %v259 = vadd.f32 0.0, %v258
    %260 = vmatmul.f32.gmra.mxu0 %v149
    %v261 = vpop.f32.mrf.mxu0
    %v262 = vadd.f32 0.0, %v261
    %263 = vmatmul.f32.gmra.mxu0 %v152
    %v264 = vpop.f32.mrf.mxu0
    %v265 = vadd.f32 0.0, %v264
    %266 = vmatmul.f32.gmra.mxu0 %v155
    %v267 = vpop.f32.mrf.mxu0
    %v268 = vadd.f32 0.0, %v267
    %269 = vmatmul.f32.gmra.mxu0 %v158
    %v270 = vpop.f32.mrf.mxu0
    %v271 = vadd.f32 0.0, %v270
    %272 = vmatmul.f32.gmra.mxu0 %v161
    %v273 = vpop.f32.mrf.mxu0
    %v274 = vadd.f32 0.0, %v273
    %275 = vmatmul.f32.gmra.mxu0 %v164
    %v276 = vpop.f32.mrf.mxu0
    %v277 = vadd.f32 0.0, %v276
    %278 = vmatmul.f32.gmra.mxu0 %v167
    %v279 = vpop.f32.mrf.mxu0
    %v280 = vadd.f32 0.0, %v279
    %281 = vmatmul.f32.gmra.mxu0 %v170
    %v282 = vpop.f32.mrf.mxu0
    %v283 = vadd.f32 0.0, %v282
    %284 = vmatmul.f32.gmra.mxu0 %v173
    %v285 = vpop.f32.mrf.mxu0
    %v286 = vadd.f32 0.0, %v285
    %287 = vmatmul.f32.gmra.mxu0 %v176
    %v288 = vpop.f32.mrf.mxu0
    %v289 = vadd.f32 0.0, %v288
    %290 = vmatmul.f32.gmra.mxu0 %v179
    %v291 = vpop.f32.mrf.mxu0
    %v292 = vadd.f32 0.0, %v291
    %293 = vmatmul.f32.gmra.mxu0 %v182
    %v294 = vpop.f32.mrf.mxu0
    %v295 = vadd.f32 0.0, %v294
    %296 = vmatmul.f32.gmra.mxu0 %v185
    %v297 = vpop.f32.mrf.mxu0
    %v298 = vadd.f32 0.0, %v297
    %299 = vmatmul.f32.gmra.mxu0 %v188
    %v300 = vpop.f32.mrf.mxu0
    %v301 = vadd.f32 0.0, %v300
    %302 = vmatmul.f32.gmra.mxu0 %v191
    %v303 = vpop.f32.mrf.mxu0
    %v304 = vadd.f32 0.0, %v303
    %305 = vmatmul.f32.gmra.mxu0 %v194
    %v306 = vpop.f32.mrf.mxu0
    %v307 = vadd.f32 0.0, %v306
    %308 = vmatmul.f32.gmra.mxu0 %v197
    %v309 = vpop.f32.mrf.mxu0
    %v310 = vadd.f32 0.0, %v309
    %311 = vmatmul.f32.gmra.mxu0 %v200
    %v312 = vpop.f32.mrf.mxu0
    %v313 = vadd.f32 0.0, %v312
    %314 = vmatmul.f32.gmra.mxu0 %v203
    %v315 = vpop.f32.mrf.mxu0
    %v316 = vadd.f32 0.0, %v315
    %317 = vmatmul.f32.gmra.mxu0 %v206
    %v318 = vpop.f32.mrf.mxu0
    %v319 = vadd.f32 0.0, %v318
    %320 = vmatmul.f32.gmra.mxu0 %v209
    %v321 = vpop.f32.mrf.mxu0
    %v322 = vadd.f32 0.0, %v321
    %323 = vdwg.mxu0
    %v324 = vsel %vm114, %v229, -inf
    %v325 = vsel %vm114, %v232, -inf
    %v326 = vmax.f32 %v324, %v325
    %v327 = vrot.slane %v326, 4
    %v328 = vmax.f32 %v326, %v327
    %v329 = vrot.slane %v328, 2
    %v330 = vmax.f32 %v328, %v329
    %v331 = vrot.slane %v330, 1
    %v332 = vmax.f32 %v330, %v331
    %v333 = vsel %vm114, %v235, -inf
    %v334 = vsel %vm114, %v238, -inf
    %v335 = vmax.f32 %v333, %v334
    %v336 = vrot.slane %v335, 4
    %v337 = vmax.f32 %v335, %v336
    %v338 = vrot.slane %v337, 2
    %v339 = vmax.f32 %v337, %v338
    %v340 = vrot.slane %v339, 1
    %v341 = vmax.f32 %v339, %v340
    %v342 = vsel %vm114, %v241, -inf
    %v343 = vsel %vm114, %v244, -inf
    %v344 = vmax.f32 %v342, %v343
    %v345 = vrot.slane %v344, 4
    %v346 = vmax.f32 %v344, %v345
    %v347 = vrot.slane %v346, 2
    %v348 = vmax.f32 %v346, %v347
    %v349 = vrot.slane %v348, 1
    %v350 = vmax.f32 %v348, %v349
    %v351 = vsel %vm114, %v247, -inf
    %v352 = vsel %vm114, %v250, -inf
    %v353 = vmax.f32 %v351, %v352
    %v354 = vrot.slane %v353, 4
    %v355 = vmax.f32 %v353, %v354
    %v356 = vrot.slane %v355, 2
    %v357 = vmax.f32 %v355, %v356
    %v358 = vrot.slane %v357, 1
    %v359 = vmax.f32 %v357, %v358
    %v360 = vsel %vm114, %v253, -inf
    %v361 = vsel %vm114, %v256, -inf
    %v362 = vmax.f32 %v360, %v361
    %v363 = vrot.slane %v362, 4
    %v364 = vmax.f32 %v362, %v363
    %v365 = vrot.slane %v364, 2
    %v366 = vmax.f32 %v364, %v365
    %v367 = vrot.slane %v366, 1
    %v368 = vmax.f32 %v366, %v367
    %v369 = vsel %vm114, %v259, -inf
    %v370 = vsel %vm114, %v262, -inf
    %v371 = vmax.f32 %v369, %v370
    %v372 = vrot.slane %v371, 4
    %v373 = vmax.f32 %v371, %v372
    %v374 = vrot.slane %v373, 2
    %v375 = vmax.f32 %v373, %v374
    %v376 = vrot.slane %v375, 1
    %v377 = vmax.f32 %v375, %v376
    %v378 = vsel %vm114, %v265, -inf
    %v379 = vsel %vm114, %v268, -inf
    %v380 = vmax.f32 %v378, %v379
    %v381 = vrot.slane %v380, 4
    %v382 = vmax.f32 %v380, %v381
    %v383 = vrot.slane %v382, 2
    %v384 = vmax.f32 %v382, %v383
    %v385 = vrot.slane %v384, 1
    %v386 = vmax.f32 %v384, %v385
    %v387 = vsel %vm114, %v271, -inf
    %v388 = vsel %vm114, %v274, -inf
    %v389 = vmax.f32 %v387, %v388
    %v390 = vrot.slane %v389, 4
    %v391 = vmax.f32 %v389, %v390
    %v392 = vrot.slane %v391, 2
    %v393 = vmax.f32 %v391, %v392
    %v394 = vrot.slane %v393, 1
    %v395 = vmax.f32 %v393, %v394
    %v396 = vsel %vm114, %v277, -inf
    %v397 = vsel %vm114, %v280, -inf
    %v398 = vmax.f32 %v396, %v397
    %v399 = vrot.slane %v398, 4
    %v400 = vmax.f32 %v398, %v399
    %v401 = vrot.slane %v400, 2
    %v402 = vmax.f32 %v400, %v401
    %v403 = vrot.slane %v402, 1
    %v404 = vmax.f32 %v402, %v403
    %v405 = vsel %vm114, %v283, -inf
    %v406 = vsel %vm114, %v286, -inf
    %v407 = vmax.f32 %v405, %v406
    %v408 = vrot.slane %v407, 4
    %v409 = vmax.f32 %v407, %v408
    %v410 = vrot.slane %v409, 2
    %v411 = vmax.f32 %v409, %v410
    %v412 = vrot.slane %v411, 1
    %v413 = vmax.f32 %v411, %v412
    %v414 = vsel %vm114, %v289, -inf
    %v415 = vsel %vm114, %v292, -inf
    %v416 = vmax.f32 %v414, %v415
    %v417 = vrot.slane %v416, 4
    %v418 = vmax.f32 %v416, %v417
    %v419 = vrot.slane %v418, 2
    %v420 = vmax.f32 %v418, %v419
    %v421 = vrot.slane %v420, 1
    %v422 = vmax.f32 %v420, %v421
    %v423 = vsel %vm114, %v295, -inf
    %v424 = vsel %vm114, %v298, -inf
    %v425 = vmax.f32 %v423, %v424
    %v426 = vrot.slane %v425, 4
    %v427 = vmax.f32 %v425, %v426
    %v428 = vrot.slane %v427, 2
    %v429 = vmax.f32 %v427, %v428
    %v430 = vrot.slane %v429, 1
    %v431 = vmax.f32 %v429, %v430
    %v432 = vsel %vm114, %v301, -inf
    %v433 = vsel %vm114, %v304, -inf
    %v434 = vmax.f32 %v432, %v433
    %v435 = vrot.slane %v434, 4
    %v436 = vmax.f32 %v434, %v435
    %v437 = vrot.slane %v436, 2
    %v438 = vmax.f32 %v436, %v437
    %v439 = vrot.slane %v438, 1
    %v440 = vmax.f32 %v438, %v439
    %v441 = vsel %vm114, %v307, -inf
    %v442 = vsel %vm114, %v310, -inf
    %v443 = vmax.f32 %v441, %v442
    %v444 = vrot.slane %v443, 4
    %v445 = vmax.f32 %v443, %v444
    %v446 = vrot.slane %v445, 2
    %v447 = vmax.f32 %v445, %v446
    %v448 = vrot.slane %v447, 1
    %v449 = vmax.f32 %v447, %v448
    %v450 = vsel %vm114, %v313, -inf
    %v451 = vsel %vm114, %v316, -inf
    %v452 = vmax.f32 %v450, %v451
    %v453 = vrot.slane %v452, 4
    %v454 = vmax.f32 %v452, %v453
    %v455 = vrot.slane %v454, 2
    %v456 = vmax.f32 %v454, %v455
    %v457 = vrot.slane %v456, 1
    %v458 = vmax.f32 %v456, %v457
    %v459 = vsel %vm114, %v319, -inf
    %v460 = vsel %vm114, %v322, -inf
    %v461 = vmax.f32 %v459, %v460
    %v462 = vrot.slane %v461, 4
    %v463 = vmax.f32 %v461, %v462
    %v464 = vrot.slane %v463, 2
    %v465 = vmax.f32 %v463, %v464
    %v466 = vrot.slane %v465, 1
    %v467 = vmax.f32 %v465, %v466
    %v468 = vsub.f32 %v229, %v332
    %v469 = vsub.f32 %v232, %v332
    %v470 = vsub.f32 %v235, %v341
    %v471 = vsub.f32 %v238, %v341
    %v472 = vsub.f32 %v241, %v350
    %v473 = vsub.f32 %v244, %v350
    %v474 = vsub.f32 %v247, %v359
    %v475 = vsub.f32 %v250, %v359
    %v476 = vsub.f32 %v253, %v368
    %v477 = vsub.f32 %v256, %v368
    %v478 = vsub.f32 %v259, %v377
    %v479 = vsub.f32 %v262, %v377
    %v480 = vsub.f32 %v265, %v386
    %v481 = vsub.f32 %v268, %v386
    %v482 = vsub.f32 %v271, %v395
    %v483 = vsub.f32 %v274, %v395
    %v484 = vsub.f32 %v277, %v404
    %v485 = vsub.f32 %v280, %v404
    %v486 = vsub.f32 %v283, %v413
    %v487 = vsub.f32 %v286, %v413
    %v488 = vsub.f32 %v289, %v422
    %v489 = vsub.f32 %v292, %v422
    %v490 = vsub.f32 %v295, %v431
    %v491 = vsub.f32 %v298, %v431
    %v492 = vsub.f32 %v301, %v440
    %v493 = vsub.f32 %v304, %v440
    %v494 = vsub.f32 %v307, %v449
    %v495 = vsub.f32 %v310, %v449
    %v496 = vsub.f32 %v313, %v458
    %v497 = vsub.f32 %v316, %v458
    %v498 = vsub.f32 %v319, %v467
    %v499 = vsub.f32 %v322, %v467
    %v500 = vmul.f32 %v468, 1.442695
    %v501 = vpow.pop %v500
    %v502 = vmul.f32 %v469, 1.442695
    %v503 = vpow.pop %v502
    %v504 = vmul.f32 %v470, 1.442695
    %v505 = vpow.pop %v504
    %v506 = vmul.f32 %v471, 1.442695
    %v507 = vpow.pop %v506
    %v508 = vmul.f32 %v472, 1.442695
    %v509 = vpow.pop %v508
    %v510 = vmul.f32 %v473, 1.442695
    %v511 = vpow.pop %v510
    %v512 = vmul.f32 %v474, 1.442695
    %v513 = vpow.pop %v512
    %v514 = vmul.f32 %v475, 1.442695
    %v515 = vpow.pop %v514
    %v516 = vmul.f32 %v476, 1.442695
    %v517 = vpow.pop %v516
    %v518 = vmul.f32 %v477, 1.442695
    %v519 = vpow.pop %v518
    %v520 = vmul.f32 %v478, 1.442695
    %v521 = vpow.pop %v520
    %v522 = vmul.f32 %v479, 1.442695
    %v523 = vpow.pop %v522
    %v524 = vmul.f32 %v480, 1.442695
    %v525 = vpow.pop %v524
    %v526 = vmul.f32 %v481, 1.442695
    %v527 = vpow.pop %v526
    %v528 = vmul.f32 %v482, 1.442695
    %v529 = vpow.pop %v528
    %v530 = vmul.f32 %v483, 1.442695
    %v531 = vpow.pop %v530
    %v532 = vmul.f32 %v484, 1.442695
    %v533 = vpow.pop %v532
    %v534 = vmul.f32 %v485, 1.442695
    %v535 = vpow.pop %v534
    %v536 = vmul.f32 %v486, 1.442695
    %v537 = vpow.pop %v536
    %v538 = vmul.f32 %v487, 1.442695
    %v539 = vpow.pop %v538
    %v540 = vmul.f32 %v488, 1.442695
    %v541 = vpow.pop %v540
    %v542 = vmul.f32 %v489, 1.442695
    %v543 = vpow.pop %v542
    %v544 = vmul.f32 %v490, 1.442695
    %v545 = vpow.pop %v544
    %v546 = vmul.f32 %v491, 1.442695
    %v547 = vpow.pop %v546
    %v548 = vmul.f32 %v492, 1.442695
    %v549 = vpow.pop %v548
    %v550 = vmul.f32 %v493, 1.442695
    %v551 = vpow.pop %v550
    %v552 = vmul.f32 %v494, 1.442695
    %v553 = vpow.pop %v552
    %v554 = vmul.f32 %v495, 1.442695
    %v555 = vpow.pop %v554
    %v556 = vmul.f32 %v496, 1.442695
    %v557 = vpow.pop %v556
    %v558 = vmul.f32 %v497, 1.442695
    %v559 = vpow.pop %v558
    %v560 = vmul.f32 %v498, 1.442695
    %v561 = vpow.pop %v560
    %v562 = vmul.f32 %v499, 1.442695
    %v563 = vpow.pop %v562
    %v564 = vsel %vm114, %v501, 0.0
    %v565 = vsel %vm114, %v503, 0.0
    %v566 = vadd.f32 %v564, %v565
    %v567 = vrot.slane %v566, 4
    %v568 = vadd.f32 %v566, %v567
    %v569 = vrot.slane %v568, 2
    %v570 = vadd.f32 %v568, %v569
    %v571 = vrot.slane %v570, 1
    %v572 = vadd.f32 %v570, %v571
    %v573 = vsel %vm114, %v505, 0.0
    %v574 = vsel %vm114, %v507, 0.0
    %v575 = vadd.f32 %v573, %v574
    %v576 = vrot.slane %v575, 4
    %v577 = vadd.f32 %v575, %v576
    %v578 = vrot.slane %v577, 2
    %v579 = vadd.f32 %v577, %v578
    %v580 = vrot.slane %v579, 1
    %v581 = vadd.f32 %v579, %v580
    %v582 = vsel %vm114, %v509, 0.0
    %v583 = vsel %vm114, %v511, 0.0
    %v584 = vadd.f32 %v582, %v583
    %v585 = vrot.slane %v584, 4
    %v586 = vadd.f32 %v584, %v585
    %v587 = vrot.slane %v586, 2
    %v588 = vadd.f32 %v586, %v587
    %v589 = vrot.slane %v588, 1
    %v590 = vadd.f32 %v588, %v589
    %v591 = vsel %vm114, %v513, 0.0
    %v592 = vsel %vm114, %v515, 0.0
    %v593 = vadd.f32 %v591, %v592
    %v594 = vrot.slane %v593, 4
    %v595 = vadd.f32 %v593, %v594
    %v596 = vrot.slane %v595, 2
    %v597 = vadd.f32 %v595, %v596
    %v598 = vrot.slane %v597, 1
    %v599 = vadd.f32 %v597, %v598
    %v600 = vsel %vm114, %v517, 0.0
    %v601 = vsel %vm114, %v519, 0.0
    %v602 = vadd.f32 %v600, %v601
    %v603 = vrot.slane %v602, 4
    %v604 = vadd.f32 %v602, %v603
    %v605 = vrot.slane %v604, 2
    %v606 = vadd.f32 %v604, %v605
    %v607 = vrot.slane %v606, 1
    %v608 = vadd.f32 %v606, %v607
    %v609 = vsel %vm114, %v521, 0.0
    %v610 = vsel %vm114, %v523, 0.0
    %v611 = vadd.f32 %v609, %v610
    %v612 = vrot.slane %v611, 4
    %v613 = vadd.f32 %v611, %v612
    %v614 = vrot.slane %v613, 2
    %v615 = vadd.f32 %v613, %v614
    %v616 = vrot.slane %v615, 1
    %v617 = vadd.f32 %v615, %v616
    %v618 = vsel %vm114, %v525, 0.0
    %v619 = vsel %vm114, %v527, 0.0
    %v620 = vadd.f32 %v618, %v619
    %v621 = vrot.slane %v620, 4
    %v622 = vadd.f32 %v620, %v621
    %v623 = vrot.slane %v622, 2
    %v624 = vadd.f32 %v622, %v623
    %v625 = vrot.slane %v624, 1
    %v626 = vadd.f32 %v624, %v625
    %v627 = vsel %vm114, %v529, 0.0
    %v628 = vsel %vm114, %v531, 0.0
    %v629 = vadd.f32 %v627, %v628
    %v630 = vrot.slane %v629, 4
    %v631 = vadd.f32 %v629, %v630
    %v632 = vrot.slane %v631, 2
    %v633 = vadd.f32 %v631, %v632
    %v634 = vrot.slane %v633, 1
    %v635 = vadd.f32 %v633, %v634
    %v636 = vsel %vm114, %v533, 0.0
    %v637 = vsel %vm114, %v535, 0.0
    %v638 = vadd.f32 %v636, %v637
    %v639 = vrot.slane %v638, 4
    %v640 = vadd.f32 %v638, %v639
    %v641 = vrot.slane %v640, 2
    %v642 = vadd.f32 %v640, %v641
    %v643 = vrot.slane %v642, 1
    %v644 = vadd.f32 %v642, %v643
    %v645 = vsel %vm114, %v537, 0.0
    %v646 = vsel %vm114, %v539, 0.0
    %v647 = vadd.f32 %v645, %v646
    %v648 = vrot.slane %v647, 4
    %v649 = vadd.f32 %v647, %v648
    %v650 = vrot.slane %v649, 2
    %v651 = vadd.f32 %v649, %v650
    %v652 = vrot.slane %v651, 1
    %v653 = vadd.f32 %v651, %v652
    %v654 = vsel %vm114, %v541, 0.0
    %v655 = vsel %vm114, %v543, 0.0
    %v656 = vadd.f32 %v654, %v655
    %v657 = vrot.slane %v656, 4
    %v658 = vadd.f32 %v656, %v657
    %v659 = vrot.slane %v658, 2
    %v660 = vadd.f32 %v658, %v659
    %v661 = vrot.slane %v660, 1
    %v662 = vadd.f32 %v660, %v661
    %v663 = vsel %vm114, %v545, 0.0
    %v664 = vsel %vm114, %v547, 0.0
    %v665 = vadd.f32 %v663, %v664
    %v666 = vrot.slane %v665, 4
    %v667 = vadd.f32 %v665, %v666
    %v668 = vrot.slane %v667, 2
    %v669 = vadd.f32 %v667, %v668
    %v670 = vrot.slane %v669, 1
    %v671 = vadd.f32 %v669, %v670
    %v672 = vsel %vm114, %v549, 0.0
    %v673 = vsel %vm114, %v551, 0.0
    %v674 = vadd.f32 %v672, %v673
    %v675 = vrot.slane %v674, 4
    %v676 = vadd.f32 %v674, %v675
    %v677 = vrot.slane %v676, 2
    %v678 = vadd.f32 %v676, %v677
    %v679 = vrot.slane %v678, 1
    %v680 = vadd.f32 %v678, %v679
    %v681 = vsel %vm114, %v553, 0.0
    %v682 = vsel %vm114, %v555, 0.0
    %v683 = vadd.f32 %v681, %v682
    %v684 = vrot.slane %v683, 4
    %v685 = vadd.f32 %v683, %v684
    %v686 = vrot.slane %v685, 2
    %v687 = vadd.f32 %v685, %v686
    %v688 = vrot.slane %v687, 1
    %v689 = vadd.f32 %v687, %v688
    %v690 = vsel %vm114, %v557, 0.0
    %v691 = vsel %vm114, %v559, 0.0
    %v692 = vadd.f32 %v690, %v691
    %v693 = vrot.slane %v692, 4
    %v694 = vadd.f32 %v692, %v693
    %v695 = vrot.slane %v694, 2
    %v696 = vadd.f32 %v694, %v695
    %v697 = vrot.slane %v696, 1
    %v698 = vadd.f32 %v696, %v697
    %v699 = vsel %vm114, %v561, 0.0
    %v700 = vsel %vm114, %v563, 0.0
    %v701 = vadd.f32 %v699, %v700
    %v702 = vrot.slane %v701, 4
    %v703 = vadd.f32 %v701, %v702
    %v704 = vrot.slane %v703, 2
    %v705 = vadd.f32 %v703, %v704
    %v706 = vrot.slane %v705, 1
    %v707 = vadd.f32 %v705, %v706
    %v708 = vrcp.pop %v572
    %v709 = vrcp.pop %v581
    %v710 = vrcp.pop %v590
    %v711 = vrcp.pop %v599
    %v712 = vrcp.pop %v608
    %v713 = vrcp.pop %v617
    %v714 = vrcp.pop %v626
    %v715 = vrcp.pop %v635
    %v716 = vrcp.pop %v644
    %v717 = vrcp.pop %v653
    %v718 = vrcp.pop %v662
    %v719 = vrcp.pop %v671
    %v720 = vrcp.pop %v680
    %v721 = vrcp.pop %v689
    %v722 = vrcp.pop %v698
    %v723 = vrcp.pop %v707
    %v724 = vmul.f32 %v501, %v708
    %v725 = vmul.f32 %v503, %v708
    %v726 = vmul.f32 %v505, %v709
    %v727 = vmul.f32 %v507, %v709
    %v728 = vmul.f32 %v509, %v710
    %v729 = vmul.f32 %v511, %v710
    %v730 = vmul.f32 %v513, %v711
    %v731 = vmul.f32 %v515, %v711
    %v732 = vmul.f32 %v517, %v712
    %v733 = vmul.f32 %v519, %v712
    %v734 = vmul.f32 %v521, %v713
    %v735 = vmul.f32 %v523, %v713
    %v736 = vmul.f32 %v525, %v714
    %v737 = vmul.f32 %v527, %v714
    %v738 = vmul.f32 %v529, %v715
    %v739 = vmul.f32 %v531, %v715
    %v740 = vmul.f32 %v533, %v716
    %v741 = vmul.f32 %v535, %v716
    %v742 = vmul.f32 %v537, %v717
    %v743 = vmul.f32 %v539, %v717
    %v744 = vmul.f32 %v541, %v718
    %v745 = vmul.f32 %v543, %v718
    %v746 = vmul.f32 %v545, %v719
    %v747 = vmul.f32 %v547, %v719
    %v748 = vmul.f32 %v549, %v720
    %v749 = vmul.f32 %v551, %v720
    %v750 = vmul.f32 %v553, %v721
    %v751 = vmul.f32 %v555, %v721
    %v752 = vmul.f32 %v557, %v722
    %v753 = vmul.f32 %v559, %v722
    %v754 = vmul.f32 %v561, %v723
    %v755 = vmul.f32 %v563, %v723
    %v756 = vmul.f32 %v78, %v724
    %v757 = vmul.f32 %v79, %v725
    %v758 = vmul.f32 %v80, %v726
    %v759 = vmul.f32 %v81, %v727
    %v760 = vmul.f32 %v82, %v728
    %v761 = vmul.f32 %v83, %v729
    %v762 = vmul.f32 %v84, %v730
    %v763 = vmul.f32 %v85, %v731
    %v764 = vmul.f32 %v86, %v732
    %v765 = vmul.f32 %v87, %v733
    %v766 = vmul.f32 %v88, %v734
    %v767 = vmul.f32 %v89, %v735
    %v768 = vmul.f32 %v90, %v736
    %v769 = vmul.f32 %v91, %v737
    %v770 = vmul.f32 %v92, %v738
    %v771 = vmul.f32 %v93, %v739
    %v772 = vmul.f32 %v94, %v740
    %v773 = vmul.f32 %v95, %v741
    %v774 = vmul.f32 %v96, %v742
    %v775 = vmul.f32 %v97, %v743
    %v776 = vmul.f32 %v98, %v744
    %v777 = vmul.f32 %v99, %v745
    %v778 = vmul.f32 %v100, %v746
    %v779 = vmul.f32 %v101, %v747
    %v780 = vmul.f32 %v102, %v748
    %v781 = vmul.f32 %v103, %v749
    %v782 = vmul.f32 %v104, %v750
    %v783 = vmul.f32 %v105, %v751
    %v784 = vmul.f32 %v106, %v752
    %v785 = vmul.f32 %v107, %v753
    %v786 = vmul.f32 %v108, %v754
    %v787 = vmul.f32 %v109, %v755
    %v788 = vsel %vm114, %v756, 0.0
    %v789 = vsel %vm114, %v757, 0.0
    %v790 = vadd.f32 %v788, %v789
    %v791 = vrot.slane %v790, 4
    %v792 = vadd.f32 %v790, %v791
    %v793 = vrot.slane %v792, 2
    %v794 = vadd.f32 %v792, %v793
    %v795 = vrot.slane %v794, 1
    %v796 = vadd.f32 %v794, %v795
    %v797 = vsel %vm114, %v758, 0.0
    %v798 = vsel %vm114, %v759, 0.0
    %v799 = vadd.f32 %v797, %v798
    %v800 = vrot.slane %v799, 4
    %v801 = vadd.f32 %v799, %v800
    %v802 = vrot.slane %v801, 2
    %v803 = vadd.f32 %v801, %v802
    %v804 = vrot.slane %v803, 1
    %v805 = vadd.f32 %v803, %v804
    %v806 = vsel %vm114, %v760, 0.0
    %v807 = vsel %vm114, %v761, 0.0
    %v808 = vadd.f32 %v806, %v807
    %v809 = vrot.slane %v808, 4
    %v810 = vadd.f32 %v808, %v809
    %v811 = vrot.slane %v810, 2
    %v812 = vadd.f32 %v810, %v811
    %v813 = vrot.slane %v812, 1
    %v814 = vadd.f32 %v812, %v813
    %v815 = vsel %vm114, %v762, 0.0
    %v816 = vsel %vm114, %v763, 0.0
    %v817 = vadd.f32 %v815, %v816
    %v818 = vrot.slane %v817, 4
    %v819 = vadd.f32 %v817, %v818
    %v820 = vrot.slane %v819, 2
    %v821 = vadd.f32 %v819, %v820
    %v822 = vrot.slane %v821, 1
    %v823 = vadd.f32 %v821, %v822
    %v824 = vsel %vm114, %v764, 0.0
    %v825 = vsel %vm114, %v765, 0.0
    %v826 = vadd.f32 %v824, %v825
    %v827 = vrot.slane %v826, 4
    %v828 = vadd.f32 %v826, %v827
    %v829 = vrot.slane %v828, 2
    %v830 = vadd.f32 %v828, %v829
    %v831 = vrot.slane %v830, 1
    %v832 = vadd.f32 %v830, %v831
    %v833 = vsel %vm114, %v766, 0.0
    %v834 = vsel %vm114, %v767, 0.0
    %v835 = vadd.f32 %v833, %v834
    %v836 = vrot.slane %v835, 4
    %v837 = vadd.f32 %v835, %v836
    %v838 = vrot.slane %v837, 2
    %v839 = vadd.f32 %v837, %v838
    %v840 = vrot.slane %v839, 1
    %v841 = vadd.f32 %v839, %v840
    %v842 = vsel %vm114, %v768, 0.0
    %v843 = vsel %vm114, %v769, 0.0
    %v844 = vadd.f32 %v842, %v843
    %v845 = vrot.slane %v844, 4
    %v846 = vadd.f32 %v844, %v845
    %v847 = vrot.slane %v846, 2
    %v848 = vadd.f32 %v846, %v847
    %v849 = vrot.slane %v848, 1
    %v850 = vadd.f32 %v848, %v849
    %v851 = vsel %vm114, %v770, 0.0
    %v852 = vsel %vm114, %v771, 0.0
    %v853 = vadd.f32 %v851, %v852
    %v854 = vrot.slane %v853, 4
    %v855 = vadd.f32 %v853, %v854
    %v856 = vrot.slane %v855, 2
    %v857 = vadd.f32 %v855, %v856
    %v858 = vrot.slane %v857, 1
    %v859 = vadd.f32 %v857, %v858
    %v860 = vsel %vm114, %v772, 0.0
    %v861 = vsel %vm114, %v773, 0.0
    %v862 = vadd.f32 %v860, %v861
    %v863 = vrot.slane %v862, 4
    %v864 = vadd.f32 %v862, %v863
    %v865 = vrot.slane %v864, 2
    %v866 = vadd.f32 %v864, %v865
    %v867 = vrot.slane %v866, 1
    %v868 = vadd.f32 %v866, %v867
    %v869 = vsel %vm114, %v774, 0.0
    %v870 = vsel %vm114, %v775, 0.0
    %v871 = vadd.f32 %v869, %v870
    %v872 = vrot.slane %v871, 4
    %v873 = vadd.f32 %v871, %v872
    %v874 = vrot.slane %v873, 2
    %v875 = vadd.f32 %v873, %v874
    %v876 = vrot.slane %v875, 1
    %v877 = vadd.f32 %v875, %v876
    %v878 = vsel %vm114, %v776, 0.0
    %v879 = vsel %vm114, %v777, 0.0
    %v880 = vadd.f32 %v878, %v879
    %v881 = vrot.slane %v880, 4
    %v882 = vadd.f32 %v880, %v881
    %v883 = vrot.slane %v882, 2
    %v884 = vadd.f32 %v882, %v883
    %v885 = vrot.slane %v884, 1
    %v886 = vadd.f32 %v884, %v885
    %v887 = vsel %vm114, %v778, 0.0
    %v888 = vsel %vm114, %v779, 0.0
    %v889 = vadd.f32 %v887, %v888
    %v890 = vrot.slane %v889, 4
    %v891 = vadd.f32 %v889, %v890
    %v892 = vrot.slane %v891, 2
    %v893 = vadd.f32 %v891, %v892
    %v894 = vrot.slane %v893, 1
    %v895 = vadd.f32 %v893, %v894
    %v896 = vsel %vm114, %v780, 0.0
    %v897 = vsel %vm114, %v781, 0.0
    %v898 = vadd.f32 %v896, %v897
    %v899 = vrot.slane %v898, 4
    %v900 = vadd.f32 %v898, %v899
    %v901 = vrot.slane %v900, 2
    %v902 = vadd.f32 %v900, %v901
    %v903 = vrot.slane %v902, 1
    %v904 = vadd.f32 %v902, %v903
    %v905 = vsel %vm114, %v782, 0.0
    %v906 = vsel %vm114, %v783, 0.0
    %v907 = vadd.f32 %v905, %v906
    %v908 = vrot.slane %v907, 4
    %v909 = vadd.f32 %v907, %v908
    %v910 = vrot.slane %v909, 2
    %v911 = vadd.f32 %v909, %v910
    %v912 = vrot.slane %v911, 1
    %v913 = vadd.f32 %v911, %v912
    %v914 = vsel %vm114, %v784, 0.0
    %v915 = vsel %vm114, %v785, 0.0
    %v916 = vadd.f32 %v914, %v915
    %v917 = vrot.slane %v916, 4
    %v918 = vadd.f32 %v916, %v917
    %v919 = vrot.slane %v918, 2
    %v920 = vadd.f32 %v918, %v919
    %v921 = vrot.slane %v920, 1
    %v922 = vadd.f32 %v920, %v921
    %v923 = vsel %vm114, %v786, 0.0
    %v924 = vsel %vm114, %v787, 0.0
    %v925 = vadd.f32 %v923, %v924
    %v926 = vrot.slane %v925, 4
    %v927 = vadd.f32 %v925, %v926
    %v928 = vrot.slane %v927, 2
    %v929 = vadd.f32 %v927, %v928
    %v930 = vrot.slane %v929, 1
    %v931 = vadd.f32 %v929, %v930
    %v932 = vld [vmem:[#allocation5] sm:$0xff]
    %v933 = vld [vmem:[#allocation5 + $0x8] sm:$0xff]
    %v934 = vld [vmem:[#allocation5 + $0x10] sm:$0xff]
    %v935 = vld [vmem:[#allocation5 + $0x18] sm:$0xff]
    %v936 = vld [vmem:[%s3] sm:$0x1]
    %v938 = vperm.slane %v936, 0
    %vm956 = vcmask 1041409
    %v957 = vsel %vm956, %v805, %v796
    %vm958 = vcmask 1042434
    %v959 = vsel %vm958, %v814, %v957
    %vm960 = vcmask 1043459
    %v961 = vsel %vm960, %v823, %v959
    %vm962 = vcmask 1044484
    %v963 = vsel %vm962, %v832, %v961
    %vm964 = vcmask 1045509
    %v965 = vsel %vm964, %v841, %v963
    %vm966 = vcmask 1046534
    %v967 = vsel %vm966, %v850, %v965
    %vm968 = vcmask 1047559
    %v969 = vsel %vm968, %v859, %v967
    %v970 = vsel %vm956, %v877, %v868
    %v971 = vsel %vm958, %v886, %v970
    %v972 = vsel %vm960, %v895, %v971
    %v973 = vsel %vm962, %v904, %v972
    %v974 = vsel %vm964, %v913, %v973
    %v975 = vsel %vm966, %v922, %v974
    %v976 = vsel %vm968, %v931, %v975
    %v977 = vsel %vm114, %v969, 0
    %v979 = vsel %vm114, %v976, 0
    %981 = vmatpush.msra.mxu0 0.0
    %982 = vmatpush.msra.mxu0 0.0
    %983 = vmatpush.msra.mxu0 0.0
    %984 = vmatpush.msra.mxu0 0.0
    %985 = vmatpush.msra.mxu0 0.0
    %986 = vmatpush.msra.mxu0 0.0
    %987 = vmatpush.msra.mxu0 0.0
    %988 = vmatpush.msra.mxu0 0.0
    %989 = vmatpush.msra.mxu0 0.0
    %990 = vmatpush.msra.mxu0 0.0
    %991 = vmatpush.msra.mxu0 0.0
    %992 = vmatpush.msra.mxu0 0.0
    %993 = vmatpush.msra.mxu0 %v935
    %994 = vmatpush.msra.mxu0 %v934
    %995 = vmatpush.msra.mxu0 %v933
    %996 = vmatpush.msra.mxu0 %v932
    %997 = vmatmul.f32.gmra.mxu0 %v977
    %v998 = vpop.f32.mrf.mxu0
    %v999 = vadd.f32 %v938, %v998
    %1000 = vmatmul.f32.gmra.mxu0 %v979
    %v1001 = vpop.f32.mrf.mxu0
    %v1002 = vadd.f32 %v938, %v1001
    %1003 = vdwg.mxu0
    %v1004 = vmax.f32 %v999, 0.0
    %v1005 = vmax.f32 %v1002, 0.0
    %v1006 = vld [vmem:[#allocation7] sm:$0xff]
    %v1007 = vld [vmem:[#allocation7 + $0x8] sm:$0xff]
    %v1008 = vld [vmem:[#allocation7 + $0x10] sm:$0xff]
    %v1009 = vld [vmem:[#allocation7 + $0x18] sm:$0xff]
    %v1010 = vld [vmem:[#allocation7 + $0x20] sm:$0xff]
    %v1011 = vld [vmem:[#allocation7 + $0x28] sm:$0xff]
    %v1012 = vld [vmem:[#allocation7 + $0x30] sm:$0xff]
    %v1013 = vld [vmem:[#allocation7 + $0x38] sm:$0xff]
    %v1014 = vld [vmem:[#allocation7 + $0x40] sm:$0xff]
    %v1015 = vld [vmem:[#allocation7 + $0x48] sm:$0xff]
    %v1016 = vld [vmem:[#allocation7 + $0x50] sm:$0xff]
    %v1017 = vld [vmem:[#allocation7 + $0x58] sm:$0xff]
    %v1018 = vld [vmem:[#allocation7 + $0x60] sm:$0xff]
    %v1019 = vld [vmem:[#allocation7 + $0x68] sm:$0xff]
    %v1020 = vld [vmem:[#allocation7 + $0x70] sm:$0xff]
    %v1021 = vld [vmem:[#allocation7 + $0x78] sm:$0xff]
    %v1022 = vld [vmem:[#allocation7 + $0x80] sm:$0xff]
    %v1023 = vld [vmem:[#allocation7 + $0x88] sm:$0xff]
    %v1024 = vld [vmem:[#allocation7 + $0x90] sm:$0xff]
    %v1025 = vld [vmem:[#allocation7 + $0x98] sm:$0xff]
    %v1026 = vld [vmem:[#allocation7 + $0xa0] sm:$0xff]
    %v1027 = vld [vmem:[#allocation7 + $0xa8] sm:$0xff]
    %v1028 = vld [vmem:[#allocation7 + $0xb0] sm:$0xff]
    %v1029 = vld [vmem:[#allocation7 + $0xb8] sm:$0xff]
    %v1030 = vld [vmem:[#allocation7 + $0xc0] sm:$0xff]
    %v1031 = vld [vmem:[#allocation7 + $0xc8] sm:$0xff]
    %v1032 = vld [vmem:[#allocation7 + $0xd0] sm:$0xff]
    %v1033 = vld [vmem:[#allocation7 + $0xd8] sm:$0xff]
    %v1034 = vld [vmem:[#allocation7 + $0xe0] sm:$0xff]
    %v1035 = vld [vmem:[#allocation7 + $0xe8] sm:$0xff]
    %v1036 = vld [vmem:[#allocation7 + $0xf0] sm:$0xff]
    %v1037 = vld [vmem:[#allocation7 + $0xf8] sm:$0xff]
    %v1040 = vrot.slane %v1004, 1
    %v1041 = vsel %vm956, %v1005, %v1040
    %v1042 = vsel %vm114, %v1041, 0
    %1044 = vmatpush.msra.mxu0 0.0
    %1045 = vmatpush.msra.mxu0 0.0
    %1046 = vmatpush.msra.mxu0 0.0
    %1047 = vmatpush.msra.mxu0 0.0
    %1048 = vmatpush.msra.mxu0 0.0
    %1049 = vmatpush.msra.mxu0 0.0
    %1050 = vmatpush.msra.mxu0 0.0
    %1051 = vmatpush.msra.mxu0 0.0
    %1052 = vmatpush.msra.mxu0 0.0
    %1053 = vmatpush.msra.mxu0 0.0
    %1054 = vmatpush.msra.mxu0 0.0
    %1055 = vmatpush.msra.mxu0 0.0
    %1056 = vmatpush.msra.mxu0 %v1013
    %1057 = vmatpush.msra.mxu0 %v1012
    %1058 = vmatpush.msra.mxu0 %v1011
    %1059 = vmatpush.msra.mxu0 %v1010
    %1060 = vmatmul.f32.gmra.mxu0 %v1042
    %v1061 = vpop.f32.mrf.mxu0
    %v1062 = vadd.f32 0.0, %v1061
    %1063 = vdwg.mxu0
    %v1064 = vrot.slane %v1005, 7
    %v1065 = vsel %vm956, %v1064, %v1004
    %v1066 = vsel %vm114, %v1065, 0
    %1068 = vmatpush.msra.mxu0 0.0
    %1069 = vmatpush.msra.mxu0 0.0
    %1070 = vmatpush.msra.mxu0 0.0
    %1071 = vmatpush.msra.mxu0 0.0
    %1072 = vmatpush.msra.mxu0 0.0
    %1073 = vmatpush.msra.mxu0 0.0
    %1074 = vmatpush.msra.mxu0 0.0
    %1075 = vmatpush.msra.mxu0 0.0
    %1076 = vmatpush.msra.mxu0 0.0
    %1077 = vmatpush.msra.mxu0 0.0
    %1078 = vmatpush.msra.mxu0 0.0
    %1079 = vmatpush.msra.mxu0 0.0
    %1080 = vmatpush.msra.mxu0 %v1009
    %1081 = vmatpush.msra.mxu0 %v1008
    %1082 = vmatpush.msra.mxu0 %v1007
    %1083 = vmatpush.msra.mxu0 %v1006
    %1084 = vmatmul.f32.gmra.mxu0 %v1066
    %v1085 = vpop.f32.mrf.mxu0
    %v1086 = vadd.f32 %v1062, %v1085
    %1087 = vdwg.mxu0
    %v1088 = vrot.slane %v1004, 2
    %v1089 = vrot.slane %v1005, 1
    %v1090 = vsel %vm956, %v1089, %v1088
    %v1091 = vsel %vm114, %v1090, 0
    %1093 = vmatpush.msra.mxu0 0.0
    %1094 = vmatpush.msra.mxu0 0.0
    %1095 = vmatpush.msra.mxu0 0.0
    %1096 = vmatpush.msra.mxu0 0.0
    %1097 = vmatpush.msra.mxu0 0.0
    %1098 = vmatpush.msra.mxu0 0.0
    %1099 = vmatpush.msra.mxu0 0.0
    %1100 = vmatpush.msra.mxu0 0.0
    %1101 = vmatpush.msra.mxu0 0.0
    %1102 = vmatpush.msra.mxu0 0.0
    %1103 = vmatpush.msra.mxu0 0.0
    %1104 = vmatpush.msra.mxu0 0.0
    %1105 = vmatpush.msra.mxu0 %v1017
    %1106 = vmatpush.msra.mxu0 %v1016
    %1107 = vmatpush.msra.mxu0 %v1015
    %1108 = vmatpush.msra.mxu0 %v1014
    %1109 = vmatmul.f32.gmra.mxu0 %v1091
    %v1110 = vpop.f32.mrf.mxu0
    %v1111 = vadd.f32 0.0, %v1110
    %1112 = vdwg.mxu0
    %v1113 = vadd.f32 %v1086, %v1111
    %v1114 = vrot.slane %v1004, 3
    %v1115 = vrot.slane %v1005, 2
    %v1116 = vsel %vm956, %v1115, %v1114
    %v1117 = vsel %vm114, %v1116, 0
    %1119 = vmatpush.msra.mxu0 0.0
    %1120 = vmatpush.msra.mxu0 0.0
    %1121 = vmatpush.msra.mxu0 0.0
    %1122 = vmatpush.msra.mxu0 0.0
    %1123 = vmatpush.msra.mxu0 0.0
    %1124 = vmatpush.msra.mxu0 0.0
    %1125 = vmatpush.msra.mxu0 0.0
    %1126 = vmatpush.msra.mxu0 0.0
    %1127 = vmatpush.msra.mxu0 0.0
    %1128 = vmatpush.msra.mxu0 0.0
    %1129 = vmatpush.msra.mxu0 0.0
    %1130 = vmatpush.msra.mxu0 0.0
    %1131 = vmatpush.msra.mxu0 %v1021
    %1132 = vmatpush.msra.mxu0 %v1020
    %1133 = vmatpush.msra.mxu0 %v1019
    %1134 = vmatpush.msra.mxu0 %v1018
    %1135 = vmatmul.f32.gmra.mxu0 %v1117
    %v1136 = vpop.f32.mrf.mxu0
    %v1137 = vadd.f32 0.0, %v1136
    %1138 = vdwg.mxu0
    %v1139 = vadd.f32 %v1113, %v1137
    %v1140 = vrot.slane %v1004, 4
    %v1141 = vrot.slane %v1005, 3
    %v1142 = vsel %vm956, %v1141, %v1140
    %v1143 = vsel %vm114, %v1142, 0
    %1145 = vmatpush.msra.mxu0 0.0
    %1146 = vmatpush.msra.mxu0 0.0
    %1147 = vmatpush.msra.mxu0 0.0
    %1148 = vmatpush.msra.mxu0 0.0
    %1149 = vmatpush.msra.mxu0 0.0
    %1150 = vmatpush.msra.mxu0 0.0
    %1151 = vmatpush.msra.mxu0 0.0
    %1152 = vmatpush.msra.mxu0 0.0
    %1153 = vmatpush.msra.mxu0 0.0
    %1154 = vmatpush.msra.mxu0 0.0
    %1155 = vmatpush.msra.mxu0 0.0
    %1156 = vmatpush.msra.mxu0 0.0
    %1157 = vmatpush.msra.mxu0 %v1025
    %1158 = vmatpush.msra.mxu0 %v1024
    %1159 = vmatpush.msra.mxu0 %v1023
    %1160 = vmatpush.msra.mxu0 %v1022
    %1161 = vmatmul.f32.gmra.mxu0 %v1143
    %v1162 = vpop.f32.mrf.mxu0
    %v1163 = vadd.f32 0.0, %v1162
    %1164 = vdwg.mxu0
    %v1165 = vadd.f32 %v1139, %v1163
    %v1166 = vrot.slane %v1004, 5
    %v1167 = vrot.slane %v1005, 4
    %v1168 = vsel %vm956, %v1167, %v1166
    %v1169 = vsel %vm114, %v1168, 0
    %1171 = vmatpush.msra.mxu0 0.0
    %1172 = vmatpush.msra.mxu0 0.0
    %1173 = vmatpush.msra.mxu0 0.0
    %1174 = vmatpush.msra.mxu0 0.0
    %1175 = vmatpush.msra.mxu0 0.0
    %1176 = vmatpush.msra.mxu0 0.0
    %1177 = vmatpush.msra.mxu0 0.0
    %1178 = vmatpush.msra.mxu0 0.0
    %1179 = vmatpush.msra.mxu0 0.0
    %1180 = vmatpush.msra.mxu0 0.0
    %1181 = vmatpush.msra.mxu0 0.0
    %1182 = vmatpush.msra.mxu0 0.0
    %1183 = vmatpush.msra.mxu0 %v1029
    %1184 = vmatpush.msra.mxu0 %v1028
    %1185 = vmatpush.msra.mxu0 %v1027
    %1186 = vmatpush.msra.mxu0 %v1026
    %1187 = vmatmul.f32.gmra.mxu0 %v1169
    %v1188 = vpop.f32.mrf.mxu0
    %v1189 = vadd.f32 0.0, %v1188
    %1190 = vdwg.mxu0
    %v1191 = vadd.f32 %v1165, %v1189
    %v1192 = vrot.slane %v1004, 6
    %v1193 = vrot.slane %v1005, 5
    %v1194 = vsel %vm956, %v1193, %v1192
    %v1195 = vsel %vm114, %v1194, 0
    %1197 = vmatpush.msra.mxu0 0.0
    %1198 = vmatpush.msra.mxu0 0.0
    %1199 = vmatpush.msra.mxu0 0.0
    %1200 = vmatpush.msra.mxu0 0.0
    %1201 = vmatpush.msra.mxu0 0.0
    %1202 = vmatpush.msra.mxu0 0.0
    %1203 = vmatpush.msra.mxu0 0.0
    %1204 = vmatpush.msra.mxu0 0.0
    %1205 = vmatpush.msra.mxu0 0.0
    %1206 = vmatpush.msra.mxu0 0.0
    %1207 = vmatpush.msra.mxu0 0.0
    %1208 = vmatpush.msra.mxu0 0.0
    %1209 = vmatpush.msra.mxu0 %v1033
    %1210 = vmatpush.msra.mxu0 %v1032
    %1211 = vmatpush.msra.mxu0 %v1031
    %1212 = vmatpush.msra.mxu0 %v1030
    %1213 = vmatmul.f32.gmra.mxu0 %v1195
    %v1214 = vpop.f32.mrf.mxu0
    %v1215 = vadd.f32 0.0, %v1214
    %1216 = vdwg.mxu0
    %v1217 = vadd.f32 %v1191, %v1215
    %v1218 = vrot.slane %v1004, 7
    %v1219 = vrot.slane %v1005, 6
    %v1220 = vsel %vm956, %v1219, %v1218
    %v1221 = vsel %vm114, %v1220, 0
    %1223 = vmatpush.msra.mxu0 0.0
    %1224 = vmatpush.msra.mxu0 0.0
    %1225 = vmatpush.msra.mxu0 0.0
    %1226 = vmatpush.msra.mxu0 0.0
    %1227 = vmatpush.msra.mxu0 0.0
    %1228 = vmatpush.msra.mxu0 0.0
    %1229 = vmatpush.msra.mxu0 0.0
    %1230 = vmatpush.msra.mxu0 0.0
    %1231 = vmatpush.msra.mxu0 0.0
    %1232 = vmatpush.msra.mxu0 0.0
    %1233 = vmatpush.msra.mxu0 0.0
    %1234 = vmatpush.msra.mxu0 0.0
    %1235 = vmatpush.msra.mxu0 %v1037
    %1236 = vmatpush.msra.mxu0 %v1036
    %1237 = vmatpush.msra.mxu0 %v1035
    %1238 = vmatpush.msra.mxu0 %v1034
    %1239 = vmatmul.f32.gmra.mxu0 %v1221
    %v1240 = vpop.f32.mrf.mxu0
    %v1241 = vadd.f32 0.0, %v1240
    %1242 = vdwg.mxu0
    %v1243 = vadd.f32 %v1217, %v1241
    %v1244 = vld [vmem:[%s5] sm:$0x1]
    %v1246 = vperm.slane %v1244, 0
    %v1248 = vadd.f32 %v1243, %v1246
    %v1249 = vmax.f32 %v1248, 0.0
    %v1250 = vld [vmem:[%s6] sm:$0xff]
    %v1251 = vld [vmem:[%s6 + $0x8] sm:$0xff]
    %v1252 = vld [vmem:[%s6 + $0x10] sm:$0xff]
    %v1253 = vld [vmem:[%s6 + $0x18] sm:$0xff]
    %v1254 = vld [vmem:[#allocation2] sm:$0x1]
    %v1256 = vperm.slane %v1254, 0
    %v1259 = vsel %vm114, %v1249, 0
    %1261 = vmatpush.msra.mxu0 0.0
    %1262 = vmatpush.msra.mxu0 0.0
    %1263 = vmatpush.msra.mxu0 0.0
    %1264 = vmatpush.msra.mxu0 0.0
    %1265 = vmatpush.msra.mxu0 0.0
    %1266 = vmatpush.msra.mxu0 0.0
    %1267 = vmatpush.msra.mxu0 0.0
    %1268 = vmatpush.msra.mxu0 0.0
    %1269 = vmatpush.msra.mxu0 0.0
    %1270 = vmatpush.msra.mxu0 0.0
    %1271 = vmatpush.msra.mxu0 0.0
    %1272 = vmatpush.msra.mxu0 0.0
    %1273 = vmatpush.msra.mxu0 %v1253
    %1274 = vmatpush.msra.mxu0 %v1252
    %1275 = vmatpush.msra.mxu0 %v1251
    %1276 = vmatpush.msra.mxu0 %v1250
    %1277 = vmatmul.f32.gmra.mxu0 %v1259
    %v1278 = vpop.f32.mrf.mxu0
    %v1279 = vadd.f32 %v1256, %v1278
    %1280 = vdwg.mxu0
    %vm1281 = vcmask 1024
    %1282 = vst.msk [vmem:[%s8] sm:$0x3] %vm1281, %v1279
    // Predicated region
    $region46: #{finetunemodel_forward.1} parent=1 // pred_check
      _
    $region47: #{finetunemodel_forward.1} parent=1 // pred_check_branch
      %1284 = sbr.rel (0) target = $region49
    $region48: #{finetunemodel_forward.1} parent=1 // pred_region
      _
    $region49: #{finetunemodel_forward.1} parent=1 // pred_fallthru
      _
    // Predicated region
    $region50: #{finetunemodel_forward.1} parent=1 // pred_check
      _
    $region51: #{finetunemodel_forward.1} parent=1 // pred_check_branch
      %1286 = sbr.rel (0) target = $region53
    $region52: #{finetunemodel_forward.1} parent=1 // pred_region
      _
    $region53: #{finetunemodel_forward.1} parent=1 // pred_fallthru
      _
    %1287 = vsyncpa [#allocation4], 1
    %1288 = vsyncpa [#allocation6], 1

</llo_original>
